<compile_context>
chip_gen: v6e
topology: v6e:2x2x1
jax: 0.10.0
libtpu: 0.0.40
codegen_flags: <defaults>
</compile_context>

<pallas_src>
import functools

import jax
import jax.numpy as jnp
from jax import lax
from jax.experimental import pallas as pl
from jax.experimental.pallas import tpu as pltpu


def _mse_sum_kernel(pred_ref, tgt_ref, out_ref, *, valid_rows, inv_n, needs_mask):
    i = pl.program_id(0)

    @pl.when(i == 0)
    def _init():
        out_ref[...] = jnp.zeros_like(out_ref)

    # Compute in f32 regardless of input dtype (matches target.float() + f32 acc).
    diff = pred_ref[...].astype(jnp.float32) - tgt_ref[...].astype(jnp.float32)
    sq = diff * diff

    if needs_mask:
        # The last grid block may extend past the real rows; those VMEM rows
        # hold undefined data, so zero them before reducing.
        tr, lc = sq.shape
        row_ids = lax.broadcasted_iota(jnp.int32, (tr, lc), 0)
        sq = jnp.where(i * tr + row_ids < valid_rows, sq, 0.0)

    out_ref[...] += jnp.sum(sq, axis=(0, 1), keepdims=True)

    @pl.when(i == pl.num_programs(0) - 1)
    def _finalize():
        out_ref[...] = out_ref[...] * jnp.float32(inv_n)


def _choose_layout(n_elems, itemsize, target_block_bytes):
    """Pick a lane-dense (rows, lane_cols) view + row-tile for the flat input."""
    pad = 0
    for lane_cols in (1024, 512, 256, 128):
        if n_elems % lane_cols == 0:
            break
    else:
        lane_cols = 128
        pad = (-n_elems) % lane_cols
    rows = (n_elems + pad) // lane_cols

    tile_rows = max(1, (target_block_bytes // itemsize) // lane_cols)
    if tile_rows >= 8:
        tile_rows -= tile_rows % 8      # keep sublane (8) alignment for partial blocks
    if tile_rows >= rows:
        tile_rows = rows                # single full-extent block (always legal)
    return lane_cols, rows, tile_rows, pad


def mse_loss_pallas(pred: jax.Array, target: jax.Array, *,
                    target_block_bytes: int = 4 << 20) -> jax.Array:
    """MSE loss forward, matching (pred - target.float()).pow(2).mean()."""
    assert pred.shape == target.shape, (pred.shape, target.shape)
    n = pred.size
    itemsize = jnp.dtype(pred.dtype).itemsize

    lane_cols, rows, tile_rows, pad = _choose_layout(n, itemsize, target_block_bytes)

    pred_flat = pred.reshape(-1)
    tgt_flat = target.reshape(-1)
    if pad:
        # Minimal tail pad (< 128 elems).  Both operands get identical zeros,
        # so their squared diff contributes 0; the divisor below uses true n.
        pred_flat = jnp.concatenate([pred_flat, jnp.zeros((pad,), dtype=pred.dtype)])
        tgt_flat = jnp.concatenate([tgt_flat, jnp.zeros((pad,), dtype=target.dtype)])

    pred2d = pred_flat.reshape(rows, lane_cols)
    tgt2d = tgt_flat.reshape(rows, lane_cols)

    num_blocks = pl.cdiv(rows, tile_rows)
    needs_mask = (rows % tile_rows) != 0

    kernel = functools.partial(
        _mse_sum_kernel,
        valid_rows=rows,
        inv_n=1.0 / float(n),
        needs_mask=needs_mask,
    )

    block_bytes = tile_rows * lane_cols * itemsize
    # 2 inputs x 2 pipeline buffers x block + headroom; comfortably inside
    # v5e/v6e (128 MiB physical) and v7x (64 MiB physical) VMEM budgets.
    vmem_limit = int(min(4 * block_bytes + (8 << 20), 48 << 20))

    out = pl.pallas_call(
        kernel,
        out_shape=jax.ShapeDtypeStruct((1, 1), jnp.float32),
        grid_spec=pltpu.PrefetchScalarGridSpec(
            num_scalar_prefetch=0,
            grid=(num_blocks,),
            in_specs=[
                pl.BlockSpec((tile_rows, lane_cols), lambda i: (i, 0)),
                pl.BlockSpec((tile_rows, lane_cols), lambda i: (i, 0)),
            ],
            # Same (0,0) block every step -> output stays resident (accumulator).
            out_specs=pl.BlockSpec((1, 1), lambda i: (0, 0)),
        ),
        compiler_params=pltpu.CompilerParams(
            dimension_semantics=("arbitrary",),  # sequential reduction axis
            vmem_limit_bytes=vmem_limit,
        ),
        cost_estimate=pl.CostEstimate(
            flops=3 * n,
            transcendentals=0,
            bytes_accessed=2 * n * itemsize + 4,
        ),
    )(pred2d, tgt2d)

    return out[0, 0]


if __name__ == "__main__":
    key = jax.random.PRNGKey(0)
    k_pred, k_tgt = jax.random.split(key)

    # Small NCHW-like prediction/target pair consistent with the framework.
    pred = jax.random.normal(k_pred, (2, 4, 16, 16), dtype=jnp.float32)
    target = jax.random.normal(k_tgt, (2, 4, 16, 16), dtype=jnp.float32)

    loss = mse_loss_pallas(pred, target)
    jax.block_until_ready(loss)

    # Pure-JAX reference of (pred - target.float()).pow(2).mean()
    loss_ref = jnp.mean((pred - target.astype(jnp.float32)) ** 2)

    assert loss.shape == (), loss.shape
    assert jnp.allclose(loss, loss_ref, rtol=1e-5, atol=1e-6), (loss, loss_ref)

    print("KERNEL_OK")
</pallas_src>

<mosaic_0001>
module attributes {stable_mosaic.version = 11 : i64} {
  func.func @_mse_sum_kernel(%arg0: i32, %arg1: memref<2x1024xf32, #tpu.memory_space<vmem>>, %arg2: memref<2x1024xf32, #tpu.memory_space<vmem>>, %arg3: memref<1x1xf32, #tpu.memory_space<vmem>>) attributes {dimension_semantics = [#tpu.dimension_semantics<arbitrary>], iteration_bounds = array<i64: 1>, scalar_prefetch = 0 : i64, scratch_operands = 0 : i64, tpu.core_type = #tpu.core_type<tc>, window_params = [{transform_indices = @transform_0, window_bounds = array<i64: 2, 1024>}, {transform_indices = @transform_1, window_bounds = array<i64: 2, 1024>}, {pipeline_mode = #tpu.pipeline_mode<synchronous>, transform_indices = @transform_2, window_bounds = array<i64: 1, 1>}]} {
    %c0_i32 = arith.constant 0 : i32
    %0 = arith.cmpi eq, %arg0, %c0_i32 : i32
    %1 = arith.extui %0 : i1 to i32
    %c0_i32_0 = arith.constant 0 : i32
    %2 = arith.cmpi ne, %1, %c0_i32_0 : i32
    scf.if %2 {
      %cst_10 = arith.constant 0.000000e+00 : f32
      %18 = vector.broadcast %cst_10 : f32 to vector<1x1xf32>
      %c0_11 = arith.constant 0 : index
      %c0_12 = arith.constant 0 : index
      %19 = vector.load %arg3[%c0_11, %c0_12] : memref<1x1xf32, #tpu.memory_space<vmem>>, vector<1x1xf32>
      tpu.vector_store %arg3[%c0_11, %c0_12], %18 {strides = array<i32>} : memref<1x1xf32, #tpu.memory_space<vmem>>, vector<1x1xf32>,
    } else {
    }
    %c0 = arith.constant 0 : index
    %c0_1 = arith.constant 0 : index
    %3 = vector.load %arg1[%c0, %c0_1] : memref<2x1024xf32, #tpu.memory_space<vmem>>, vector<2x1024xf32>
    %c0_2 = arith.constant 0 : index
    %c0_3 = arith.constant 0 : index
    %4 = vector.load %arg2[%c0_2, %c0_3] : memref<2x1024xf32, #tpu.memory_space<vmem>>, vector<2x1024xf32>
    %5 = arith.subf %3, %4 : vector<2x1024xf32>
    %6 = arith.mulf %5, %5 : vector<2x1024xf32>
    %c0_4 = arith.constant 0 : index
    %c0_5 = arith.constant 0 : index
    %7 = vector.load %arg3[%c0_4, %c0_5] : memref<1x1xf32, #tpu.memory_space<vmem>>, vector<1x1xf32>
    %8 = vector.shape_cast %6 : vector<2x1024xf32> to vector<1x2x1024xf32>
    %cst = arith.constant dense<0.000000e+00> : vector<1xf32>
    %9 = vector.multi_reduction <add>, %8, %cst [1, 2] : vector<1x2x1024xf32> to vector<1xf32>
    %10 = vector.shape_cast %9 : vector<1xf32> to vector<1x1x1xf32>
    %11 = vector.extract %10[0, 0, 0] : f32 from vector<1x1x1xf32>
    %12 = vector.broadcast %11 : f32 to vector<1x1xf32>
    %13 = arith.addf %7, %12 : vector<1x1xf32>
    %c0_6 = arith.constant 0 : index
    %c0_7 = arith.constant 0 : index
    %14 = vector.load %arg3[%c0_6, %c0_7] : memref<1x1xf32, #tpu.memory_space<vmem>>, vector<1x1xf32>
    tpu.vector_store %arg3[%c0_6, %c0_7], %13 {strides = array<i32>} : memref<1x1xf32, #tpu.memory_space<vmem>>, vector<1x1xf32>,
    %c0_i32_8 = arith.constant 0 : i32
    %15 = arith.cmpi eq, %arg0, %c0_i32_8 : i32
    %16 = arith.extui %15 : i1 to i32
    %c0_i32_9 = arith.constant 0 : i32
    %17 = arith.cmpi ne, %16, %c0_i32_9 : i32
    scf.if %17 {
      %c0_10 = arith.constant 0 : index
      %c0_11 = arith.constant 0 : index
      %18 = vector.load %arg3[%c0_10, %c0_11] : memref<1x1xf32, #tpu.memory_space<vmem>>, vector<1x1xf32>
      %cst_12 = arith.constant 4.8828125E-4 : f32
      %19 = vector.broadcast %cst_12 : f32 to vector<1x1xf32>
      %20 = arith.mulf %18, %19 : vector<1x1xf32>
      %c0_13 = arith.constant 0 : index
      %c0_14 = arith.constant 0 : index
      %21 = vector.load %arg3[%c0_13, %c0_14] : memref<1x1xf32, #tpu.memory_space<vmem>>, vector<1x1xf32>
      tpu.vector_store %arg3[%c0_13, %c0_14], %20 {strides = array<i32>} : memref<1x1xf32, #tpu.memory_space<vmem>>, vector<1x1xf32>,
    } else {
    }
    return
  }
  func.func @transform_0(%arg0: i32) -> (i32, i32) {
    %c0_i32 = arith.constant 0 : i32
    %c0_i32_0 = arith.constant 0 : i32
    return %arg0, %c0_i32 : i32, i32
  }
  func.func @transform_1(%arg0: i32) -> (i32, i32) {
    %c0_i32 = arith.constant 0 : i32
    %c0_i32_0 = arith.constant 0 : i32
    return %arg0, %c0_i32 : i32, i32
  }
  func.func @transform_2(%arg0: i32) -> (i32, i32) {
    %c0_i32 = arith.constant 0 : i32
    %c0_i32_0 = arith.constant 0 : i32
    %c0_i32_1 = arith.constant 0 : i32
    return %c0_i32, %c0_i32_0 : i32, i32
  }
}

</mosaic_0001>

<llo_original>
// kernel: tpu_custom_call.1
$region0: #{tpu_custom_call.1}
  #allocation0 [shape = 'u32[]', space=smem, size = 0x4, offset = 0x4, fixed_abs, tag = 'smem constant byte address 0x4 - core index']
  #allocation1 [shape = 'u32[144,128]{1,0:T(1,128)}', space=vmem, size = 0x12000, scoped, tag = 'internal scratch']
  %s0 = inlined_call_operand.hbm [shape: f32[2,1024], index: 0, kind: input, shape index: {}]
  %s1 = inlined_call_operand.hbm [shape: f32[2,1024], index: 1, kind: input, shape index: {}]
  %s2 = inlined_call_operand.hbm [shape: f32[1,1], index: 2, kind: output, shape index: {}]
  %s3 = sld [smem:[#allocation0]]
  $region34: #{tpu_custom_call.1} parent=0
    _
  %s5 = ssub.s32 1, %s3
  %s6 = scalar_select 0, %s5, %s3
  $region1: #{tpu_custom_call.1} parent=0
    #allocation2 [shape = 'u8[8192]{0}', space=vmem, size = 0x2000, scoped, tag = 'input window, operand 0, single buffered']
    #allocation3 [shape = 's32[1]{0}', space=sflag, size = 0x4, scoped, tag = 'scoped memory for tpu_custom_call.1']
    #allocation4 [shape = 's32[1]{0}', space=sflag, size = 0x4, scoped, tag = 'scoped memory for tpu_custom_call.1']
    #allocation5 [shape = 'u8[8192]{0}', space=vmem, size = 0x2000, scoped, tag = 'input window, operand 1, single buffered']
    #allocation6 [shape = 's32[1]{0}', space=sflag, size = 0x4, scoped, tag = 'scoped memory for tpu_custom_call.1']
    #allocation7 [shape = 'u8[512]{0}', space=vmem, size = 0x400, scoped, tag = 'output window, operand 0, single buffered']
    %7 = vsyncpa [#allocation3], 0
    %8 = vsyncpa [#allocation6], 0
    %9 = vsyncpa [#allocation4], 0
    // Predicated region
    $region2: #{tpu_custom_call.1} parent=1 // pred_check
      _
    $region3: #{tpu_custom_call.1} parent=1 // pred_check_branch
      %11 = sbr.rel (0) target = $region5
    $region4: #{tpu_custom_call.1} parent=1 // pred_region
      %s13 = ssub.s32 256, 256
      %14 = vsyncadd [#allocation3], %s13
      %s16 = sshll.u32 [#allocation2], 4
      %s17 = int_to_ptr.vmem [resolvable:$true] %s16
      %19 = dma.hbm_to_vmem [thread:$0]  %s0, 256, %s17, [#allocation3]
    $region5: #{tpu_custom_call.1} parent=1 // pred_fallthru
      _
    // Predicated region
    $region6: #{tpu_custom_call.1} parent=1 // pred_check
      _
    $region7: #{tpu_custom_call.1} parent=1 // pred_check_branch
      %21 = sbr.rel (0) target = $region9
    $region8: #{tpu_custom_call.1} parent=1 // pred_region
      %s23 = ssub.s32 256, 256
      %24 = vsyncadd [#allocation6], %s23
      %s26 = sshll.u32 [#allocation5], 4
      %s27 = int_to_ptr.vmem [resolvable:$true] %s26
      %29 = dma.hbm_to_vmem [thread:$0]  %s1, 256, %s27, [#allocation6]
    $region9: #{tpu_custom_call.1} parent=1 // pred_fallthru
      _
    // Predicated region
    $region10: #{tpu_custom_call.1} parent=1 // pred_check
      _
    $region11: #{tpu_custom_call.1} parent=1 // pred_check_branch
      %31 = sbr.rel (0) target = $region13
    $region12: #{tpu_custom_call.1} parent=1 // pred_region
      %32 = dma.done [#allocation3], 256
    $region13: #{tpu_custom_call.1} parent=1 // pred_fallthru
      _
    // Predicated region
    $region14: #{tpu_custom_call.1} parent=1 // pred_check
      _
    $region15: #{tpu_custom_call.1} parent=1 // pred_check_branch
      %34 = sbr.rel (0) target = $region17
    $region16: #{tpu_custom_call.1} parent=1 // pred_region
      %35 = dma.done [#allocation6], 256
    $region17: #{tpu_custom_call.1} parent=1 // pred_fallthru
      _
    %p36 = scmp.eq.s32.totalorder 0, 0
    // Predicated region
    $region18: #{tpu_custom_call.1} parent=1 // pred_check
      %p37 = pneg %p36
    $region19: #{tpu_custom_call.1} parent=1 // pred_check_branch
      %39 = sbr.rel (%p37) target = $region21
    $region20: #{tpu_custom_call.1} parent=1 // pred_region
      %vm40 = vcmask 0
      %41 = vst.msk [vmem:[#allocation7] sm:$0x1] %vm40, 0.0
    $region21: #{tpu_custom_call.1} parent=1 // pred_fallthru
      _
    %v42 = vld [vmem:[#allocation2] sm:$0xff]
    %v43 = vld [vmem:[#allocation2 + $0x8] sm:$0xff]
    %v44 = vld [vmem:[#allocation5] sm:$0xff]
    %v45 = vld [vmem:[#allocation5 + $0x8] sm:$0xff]
    %v46 = vsub.f32 %v42, %v44
    %v47 = vsub.f32 %v43, %v45
    %v48 = vmul.f32 %v46, %v46
    %v49 = vmul.f32 %v47, %v47
    %v50 = vld [vmem:[#allocation7] sm:$0x1]
    %v53 = vcombine.high %v48, %v48
    %v55 = vunpack.c.l.s4 1983009808
    %v56 = vunpack.c.0.s8 %v55
    %v57 = vlaneseq
    %v58 = vshrl.u32 %v57, 7
    %v59 = vsub.s32 %v56, %v58
    %v60 = vrot.slane %v48, %v59
    %v62 = vunpack.c.l.s4 1983009808
    %v63 = vunpack.c.0.s8 %v62
    %v64 = vlaneseq
    %v65 = vshrl.u32 %v64, 7
    %v66 = vsub.s32 %v63, %v65
    %v67 = vrot.slane %v53, %v66
    %v68 = vcombine.high %v60, %v60
    %v69 = vcombine.high %v67, %v67
    %v70 = vcombine.high %v49, %v49
    %v72 = vunpack.c.l.s4 1983009808
    %v73 = vunpack.c.0.s8 %v72
    %v74 = vlaneseq
    %v75 = vshrl.u32 %v74, 7
    %v76 = vsub.s32 %v73, %v75
    %v77 = vrot.slane %v49, %v76
    %v79 = vunpack.c.l.s4 1983009808
    %v80 = vunpack.c.0.s8 %v79
    %v81 = vlaneseq
    %v82 = vshrl.u32 %v81, 7
    %v83 = vsub.s32 %v80, %v82
    %v84 = vrot.slane %v70, %v83
    %v85 = vcombine.high %v77, %v77
    %v86 = vcombine.high %v84, %v84
    %vm95 = vcmask 1041408
    %v96 = vsel %vm95, %v60, 0.0
    %v97 = vsel %vm95, %v68, 0.0
    %v98 = vadd.f32 %v96, %v97
    %v99 = vsel %vm95, %v67, 0.0
    %v100 = vadd.f32 %v98, %v99
    %v101 = vsel %vm95, %v69, 0.0
    %v102 = vadd.f32 %v100, %v101
    %v103 = vsel %vm95, %v77, 0.0
    %v104 = vadd.f32 %v102, %v103
    %v105 = vsel %vm95, %v85, 0.0
    %v106 = vadd.f32 %v104, %v105
    %v107 = vsel %vm95, %v84, 0.0
    %v108 = vadd.f32 %v106, %v107
    %v109 = vsel %vm95, %v86, 0.0
    %v110 = vadd.f32 %v108, %v109
    %111 = vadd.xlane.f32.xlu0 %v110
    %v112 = vpop.xlane.xlu0 %111
    %v113 = vrot.slane %v112, 4
    %v114 = vadd.f32 %v112, %v113
    %v115 = vrot.slane %v114, 2
    %v116 = vadd.f32 %v114, %v115
    %v117 = vrot.slane %v116, 1
    %v118 = vadd.f32 %v116, %v117
    %s119 = vtos %v118
    %v120 = vstv %s119
    %v121 = vadd.f32 %v50, %v120
    %vm122 = vcmask 0
    %123 = vst.msk [vmem:[#allocation7] sm:$0x1] %vm122, %v121
    // Predicated region
    $region22: #{tpu_custom_call.1} parent=1 // pred_check
      %p124 = pneg %p36
    $region23: #{tpu_custom_call.1} parent=1 // pred_check_branch
      %126 = sbr.rel (%p124) target = $region25
    $region24: #{tpu_custom_call.1} parent=1 // pred_region
      %v127 = vld [vmem:[#allocation7] sm:$0x1]
      %v128 = vmul.f32 %v127, 0.00048828125
      %129 = vst.msk [vmem:[#allocation7] sm:$0x1] %vm122, %v128
    $region25: #{tpu_custom_call.1} parent=1 // pred_fallthru
      _
    // Predicated region
    $region26: #{tpu_custom_call.1} parent=1 // pred_check
      _
    $region27: #{tpu_custom_call.1} parent=1 // pred_check_branch
      %131 = sbr.rel (0) target = $region29
    $region28: #{tpu_custom_call.1} parent=1 // pred_region
      %s133 = ssub.s32 16, 16
      %134 = vsyncadd [#allocation4], %s133
      %s136 = sshll.u32 [#allocation7], 4
      %s137 = int_to_ptr.vmem [resolvable:$true] %s136
      %139 = dma.vmem_to_hbm [thread:$0]  %s137, 16, %s2, [#allocation4]
    $region29: #{tpu_custom_call.1} parent=1 // pred_fallthru
      _
    // Predicated region
    $region30: #{tpu_custom_call.1} parent=1 // pred_check
      _
    $region31: #{tpu_custom_call.1} parent=1 // pred_check_branch
      %141 = sbr.rel (0) target = $region33
    $region32: #{tpu_custom_call.1} parent=1 // pred_region
      %142 = dma.done [#allocation4], 16
    $region33: #{tpu_custom_call.1} parent=1 // pred_fallthru
      _
    %143 = vsyncpa [#allocation3], 1
    %144 = vsyncpa [#allocation6], 1
    %145 = vsyncpa [#allocation4], 1

</llo_original>
